<compile_context>
chip_gen: v5e
topology: v5e:2x2
jax: 0.10.0
libtpu: 0.0.40
codegen_flags: <defaults>
</compile_context>

<pallas_src>
import functools

import jax
import jax.numpy as jnp
from jax.experimental import pallas as pl
from jax.experimental.pallas import tpu as pltpu

LANE = 128  # pad the 1-wide output projection to a lane-dense 128-wide slab


def discriminator_kernel(x_ref, w1_ref, w2_ref, o_ref, h_acc):
    """Fused MLP block step.

    grid = (split, n_hidden_blocks_per_split, k_input_blocks)   (K innermost)
      x_ref : (B_pad, tk)  bf16    activations, blocked along K
      w1_ref: (tk, tn)     bf16    W1 block (in, out layout)
      w2_ref: (tn, LANE)   bf16    padded second projection, blocked along N
      o_ref : (B_pad, LANE) f32    resident per-split output accumulator
      h_acc : (B_pad, tn)  f32     hidden accumulator across K
    """
    n = pl.program_id(1)
    k = pl.program_id(2)
    nk = pl.num_programs(2)

    @pl.when(jnp.logical_and(n == 0, k == 0))
    def _init_out():
        o_ref[...] = jnp.zeros_like(o_ref)

    @pl.when(k == 0)
    def _init_h():
        h_acc[...] = jnp.zeros_like(h_acc)

    # First projection: accumulate this K slab into the hidden block (f32 acc).
    h_acc[...] += jnp.dot(x_ref[...], w1_ref[...],
                          preferred_element_type=jnp.float32)

    @pl.when(k == nk - 1)
    def _finalize_hidden_block():
        h = h_acc[...]
        h = jnp.maximum(h, 0.2 * h)  # LeakyReLU(0.2): one vmax, no cmp+select
        w2 = w2_ref[...]
        o_ref[...] += jnp.dot(h.astype(w2.dtype), w2,
                              preferred_element_type=jnp.float32)


def prepare_params(w1, w2, dtype=jnp.bfloat16):
    """One-time parameter prep (hoisted out of the per-call forward path).

    w1: (D, D) PyTorch layout (out, in) -> w1t: (D, D) = (in, out), bf16
    w2: (1, D) PyTorch layout (out, in) -> w2p: (D, LANE) bf16; real weights in
        lane 0, remaining lanes zero (keeps the output store lane-dense).
    """
    D = w1.shape[1]
    w1t = jnp.asarray(w1, jnp.float32).T.astype(dtype)
    w2p = jnp.zeros((D, LANE), dtype).at[:, 0].set(
        jnp.asarray(w2, jnp.float32)[0].astype(dtype))
    return w1t, w2p


def discriminator_forward(img, w1t, w2p, *, tn=512, tk=1024, n_split=2):
    """pred = LeakyReLU(img @ w1t, 0.2) @ w2p[:, :1]  via one fused Pallas call.

    img: (B, D) f32; w1t: (D, D) bf16 (in, out); w2p: (D, LANE) bf16.
    """
    B, D = img.shape
    assert w1t.shape == (D, D) and w2p.shape == (D, LANE)

    tn = min(tn, D)
    tk = min(tk, D)
    assert D % tn == 0 and D % tk == 0, "tile sizes must divide the feature dim"
    n_blocks = D // tn
    k_blocks = D // tk
    if n_blocks % n_split != 0:
        n_split = 1
    n_per_split = n_blocks // n_split

    # Pad batch to >= 8 sublanes (unmasked stores); cast activations to bf16.
    B_pad = max(8, -(-B // 8) * 8)
    x = jnp.zeros((B_pad, D), jnp.bfloat16).at[:B].set(img.astype(jnp.bfloat16))

    grid = (n_split, n_per_split, k_blocks)

    out_parts = pl.pallas_call(
        discriminator_kernel,
        out_shape=jax.ShapeDtypeStruct((n_split, B_pad, LANE), jnp.float32),
        grid=grid,
        in_specs=[
            # x: small, re-fetched per K step (negligible vs W1 stream)
            pl.BlockSpec((B_pad, tk), lambda p, n, k: (0, k)),
            # W1: the dominant HBM stream, (tk, tn) double-buffered blocks
            pl.BlockSpec((tk, tn), lambda p, n, k: (k, p * n_per_split + n)),
            # padded W2: blocked along the same hidden axis (fetched once per n)
            pl.BlockSpec((tn, LANE), lambda p, n, k: (p * n_per_split + n, 0)),
        ],
        # one resident (B_pad, LANE) partial-output block per parallel split
        out_specs=pl.BlockSpec((None, B_pad, LANE), lambda p, n, k: (p, 0, 0)),
        scratch_shapes=[pltpu.VMEM((B_pad, tn), jnp.float32)],
        compiler_params=pltpu.CompilerParams(
            dimension_semantics=("parallel", "arbitrary", "arbitrary"),
            vmem_limit_bytes=32 * 1024 * 1024,  # raise v5e's 16 MiB default
        ),
        cost_estimate=pl.CostEstimate(
            flops=2 * B_pad * D * D + 2 * B_pad * D * LANE,
            transcendentals=0,
            bytes_accessed=(w1t.size * 2 + w2p.size * 2 + x.size * 2
                            + n_split * B_pad * LANE * 4),
        ),
    )(x, w1t, w2p)

    # Each split holds a partial sum over its hidden blocks; combine + slice.
    return out_parts.sum(axis=0)[:B, :1]  # (B, 1) — matches Linear(D, 1)


if __name__ == "__main__":
    B = 2
    D = 3 * 16 * 16  # scaled-down img_size (real module uses 3*64*64 = 12288)

    key = jax.random.PRNGKey(0)
    k_img, k_w1, k_w2 = jax.random.split(key, 3)

    img = jax.random.normal(k_img, (B, D), dtype=jnp.float32)
    # PyTorch Linear default init: U(-1/sqrt(in), 1/sqrt(in)), weight (out, in)
    bound = 1.0 / (D ** 0.5)
    w1 = jax.random.uniform(k_w1, (D, D), jnp.float32, -bound, bound)  # Linear(D, D)
    w2 = jax.random.uniform(k_w2, (1, D), jnp.float32, -bound, bound)  # Linear(D, 1)

    # Hoisted, one-time parameter preparation (transpose + pad + bf16 cast).
    w1t, w2p = prepare_params(w1, w2)

    fwd = jax.jit(functools.partial(discriminator_forward,
                                    tn=128, tk=256, n_split=2))
    pred = jax.block_until_ready(fwd(img, w1t, w2p))

    # Pure-JAX reference with matching bf16 quantization of inputs/weights.
    xb = img.astype(jnp.bfloat16).astype(jnp.float32)
    w1b = w1.astype(jnp.bfloat16).astype(jnp.float32)
    w2b = w2.astype(jnp.bfloat16).astype(jnp.float32)
    h_ref = xb @ w1b.T
    h_ref = jnp.maximum(h_ref, 0.2 * h_ref)
    pred_ref = h_ref.astype(jnp.bfloat16).astype(jnp.float32) @ w2b.T

    assert pred.shape == (B, 1)
    max_err = float(jnp.max(jnp.abs(pred - pred_ref)))
    assert jnp.allclose(pred, pred_ref, atol=1e-2, rtol=1e-2), max_err

    print("KERNEL_OK")
</pallas_src>

<mosaic_0001>
module attributes {stable_mosaic.version = 11 : i64} {
  func.func @discriminator_kernel(%arg0: i32, %arg1: i32, %arg2: i32, %arg3: memref<8x256xbf16, #tpu.memory_space<vmem>>, %arg4: memref<256x128xbf16, #tpu.memory_space<vmem>>, %arg5: memref<128x128xbf16, #tpu.memory_space<vmem>>, %arg6: memref<1x8x128xf32, #tpu.memory_space<vmem>>, %arg7: memref<8x128xf32, #tpu.memory_space<vmem>>) attributes {dimension_semantics = [#tpu.dimension_semantics<parallel>, #tpu.dimension_semantics<arbitrary>, #tpu.dimension_semantics<arbitrary>], iteration_bounds = array<i64: 2, 3, 3>, scalar_prefetch = 0 : i64, scratch_operands = 1 : i64, tpu.core_type = #tpu.core_type<tc>, window_params = [{transform_indices = @transform_0, window_bounds = array<i64: 8, 256>}, {transform_indices = @transform_1, window_bounds = array<i64: 256, 128>}, {transform_indices = @transform_2, window_bounds = array<i64: 128, 128>}, {transform_indices = @transform_3, window_bounds = array<i64: 1, 8, 128>}]} {
    %c0_i32 = arith.constant 0 : i32
    %0 = arith.cmpi eq, %arg1, %c0_i32 : i32
    %c0_i32_0 = arith.constant 0 : i32
    %1 = arith.cmpi eq, %arg2, %c0_i32_0 : i32
    %2 = arith.andi %0, %1 : i1
    %3 = arith.extui %2 : i1 to i32
    %c0_i32_1 = arith.constant 0 : i32
    %4 = arith.cmpi ne, %3, %c0_i32_1 : i32
    scf.if %4 {
      %cst_12 = arith.constant 0.000000e+00 : f32
      %17 = vector.broadcast %cst_12 : f32 to vector<8x128xf32>
      %c0_13 = arith.constant 0 : index
      %c0_14 = arith.constant 0 : index
      %c0_15 = arith.constant 0 : index
      %18 = vector.load %arg6[%c0_13, %c0_14, %c0_15] : memref<1x8x128xf32, #tpu.memory_space<vmem>>, vector<1x8x128xf32>
      %19 = vector.shape_cast %18 : vector<1x8x128xf32> to vector<8x128xf32>
      %20 = vector.shape_cast %17 : vector<8x128xf32> to vector<1x8x128xf32>
      tpu.vector_store %arg6[%c0_13, %c0_14, %c0_15], %20 {strides = array<i32>} : memref<1x8x128xf32, #tpu.memory_space<vmem>>, vector<1x8x128xf32>,
    } else {
    }
    %c0_i32_2 = arith.constant 0 : i32
    %5 = arith.cmpi eq, %arg2, %c0_i32_2 : i32
    %6 = arith.extui %5 : i1 to i32
    %c0_i32_3 = arith.constant 0 : i32
    %7 = arith.cmpi ne, %6, %c0_i32_3 : i32
    scf.if %7 {
      %cst_12 = arith.constant 0.000000e+00 : f32
      %17 = vector.broadcast %cst_12 : f32 to vector<8x128xf32>
      %c0_13 = arith.constant 0 : index
      %c0_14 = arith.constant 0 : index
      %18 = vector.load %arg7[%c0_13, %c0_14] : memref<8x128xf32, #tpu.memory_space<vmem>>, vector<8x128xf32>
      tpu.vector_store %arg7[%c0_13, %c0_14], %17 {strides = array<i32>} : memref<8x128xf32, #tpu.memory_space<vmem>>, vector<8x128xf32>,
    } else {
    }
    %c0 = arith.constant 0 : index
    %c0_4 = arith.constant 0 : index
    %8 = vector.load %arg7[%c0, %c0_4] : memref<8x128xf32, #tpu.memory_space<vmem>>, vector<8x128xf32>
    %c0_5 = arith.constant 0 : index
    %c0_6 = arith.constant 0 : index
    %9 = vector.load %arg3[%c0_5, %c0_6] : memref<8x256xbf16, #tpu.memory_space<vmem>>, vector<8x256xbf16>
    %c0_7 = arith.constant 0 : index
    %c0_8 = arith.constant 0 : index
    %10 = vector.load %arg4[%c0_7, %c0_8] : memref<256x128xbf16, #tpu.memory_space<vmem>>, vector<256x128xbf16>
    %cst = arith.constant dense<0.000000e+00> : vector<8x128xf32>
    %11 = tpu.matmul %9, %10, %cst {dimension_numbers = #tpu.dot_dimension_numbers<[1], [0], [0], [1], [0, 0, 1, 1], [], []>} : vector<8x256xbf16>, vector<256x128xbf16>, vector<8x128xf32> -> vector<8x128xf32>
    %12 = arith.addf %8, %11 : vector<8x128xf32>
    %c0_9 = arith.constant 0 : index
    %c0_10 = arith.constant 0 : index
    %13 = vector.load %arg7[%c0_9, %c0_10] : memref<8x128xf32, #tpu.memory_space<vmem>>, vector<8x128xf32>
    tpu.vector_store %arg7[%c0_9, %c0_10], %12 {strides = array<i32>} : memref<8x128xf32, #tpu.memory_space<vmem>>, vector<8x128xf32>,
    %c2_i32 = arith.constant 2 : i32
    %14 = arith.cmpi eq, %arg2, %c2_i32 : i32
    %15 = arith.extui %14 : i1 to i32
    %c0_i32_11 = arith.constant 0 : i32
    %16 = arith.cmpi ne, %15, %c0_i32_11 : i32
    scf.if %16 {
      %c0_12 = arith.constant 0 : index
      %c0_13 = arith.constant 0 : index
      %17 = vector.load %arg7[%c0_12, %c0_13] : memref<8x128xf32, #tpu.memory_space<vmem>>, vector<8x128xf32>
      %cst_14 = arith.constant 2.000000e-01 : f32
      %18 = vector.broadcast %cst_14 : f32 to vector<8x128xf32>
      %19 = arith.mulf %18, %17 : vector<8x128xf32>
      %20 = arith.maximumf %17, %19 : vector<8x128xf32>
      %c0_15 = arith.constant 0 : index
      %c0_16 = arith.constant 0 : index
      %21 = vector.load %arg5[%c0_15, %c0_16] : memref<128x128xbf16, #tpu.memory_space<vmem>>, vector<128x128xbf16>
      %c0_17 = arith.constant 0 : index
      %c0_18 = arith.constant 0 : index
      %c0_19 = arith.constant 0 : index
      %22 = vector.load %arg6[%c0_17, %c0_18, %c0_19] : memref<1x8x128xf32, #tpu.memory_space<vmem>>, vector<1x8x128xf32>
      %23 = vector.shape_cast %22 : vector<1x8x128xf32> to vector<8x128xf32>
      %24 = arith.truncf %20 : vector<8x128xf32> to vector<8x128xbf16>
      %cst_20 = arith.constant dense<0.000000e+00> : vector<8x128xf32>
      %25 = tpu.matmul %24, %21, %cst_20 {dimension_numbers = #tpu.dot_dimension_numbers<[1], [0], [0], [1], [0, 0, 1, 1], [], []>} : vector<8x128xbf16>, vector<128x128xbf16>, vector<8x128xf32> -> vector<8x128xf32>
      %26 = arith.addf %23, %25 : vector<8x128xf32>
      %c0_21 = arith.constant 0 : index
      %c0_22 = arith.constant 0 : index
      %c0_23 = arith.constant 0 : index
      %27 = vector.load %arg6[%c0_21, %c0_22, %c0_23] : memref<1x8x128xf32, #tpu.memory_space<vmem>>, vector<1x8x128xf32>
      %28 = vector.shape_cast %27 : vector<1x8x128xf32> to vector<8x128xf32>
      %29 = vector.shape_cast %26 : vector<8x128xf32> to vector<1x8x128xf32>
      tpu.vector_store %arg6[%c0_21, %c0_22, %c0_23], %29 {strides = array<i32>} : memref<1x8x128xf32, #tpu.memory_space<vmem>>, vector<1x8x128xf32>,
    } else {
    }
    return
  }
  func.func @transform_0(%arg0: i32, %arg1: i32, %arg2: i32) -> (i32, i32) {
    %c0_i32 = arith.constant 0 : i32
    %c0_i32_0 = arith.constant 0 : i32
    return %c0_i32, %arg2 : i32, i32
  }
  func.func @transform_1(%arg0: i32, %arg1: i32, %arg2: i32) -> (i32, i32) {
    %c3_i32 = arith.constant 3 : i32
    %0 = arith.muli %arg0, %c3_i32 : i32
    %1 = arith.addi %0, %arg1 : i32
    %c0_i32 = arith.constant 0 : i32
    return %arg2, %1 : i32, i32
  }
  func.func @transform_2(%arg0: i32, %arg1: i32, %arg2: i32) -> (i32, i32) {
    %c3_i32 = arith.constant 3 : i32
    %0 = arith.muli %arg0, %c3_i32 : i32
    %1 = arith.addi %0, %arg1 : i32
    %c0_i32 = arith.constant 0 : i32
    %c0_i32_0 = arith.constant 0 : i32
    return %1, %c0_i32 : i32, i32
  }
  func.func @transform_3(%arg0: i32, %arg1: i32, %arg2: i32) -> (i32, i32, i32) {
    %c0_i32 = arith.constant 0 : i32
    %c0_i32_0 = arith.constant 0 : i32
    %c0_i32_1 = arith.constant 0 : i32
    return %arg0, %c0_i32, %c0_i32_0 : i32, i32, i32
  }
}

</mosaic_0001>

<llo_original>
// kernel: discriminator_forward.1
$region0: #{discriminator_forward.1}
  #allocation0 [shape = 'u32[]', space=smem, size = 0x4, offset = 0x4, fixed_abs, tag = 'smem constant byte address 0x4 - core index']
  #allocation1 [shape = 'u32[72,128]{1,0:T(1,128)}', space=vmem, size = 0x9000, scoped, tag = 'internal scratch']
  #allocation2 [shape = 'f32[8,128]{1,0:T(8,128)}', space=vmem, size = 0x1000, scoped, tag = 'scratch operand']
  %s0 = inlined_call_operand.vmem [shape: bf16[8,768], index: 0, kind: input, shape index: {}]
  %s1 = inlined_call_operand.hbm [shape: bf16[768,768], index: 1, kind: input, shape index: {}]
  %s2 = inlined_call_operand.hbm [shape: bf16[768,128], index: 2, kind: input, shape index: {}]
  %s3 = inlined_call_operand.vmem [shape: f32[2,8,128], index: 3, kind: output, shape index: {}]
  %s4 = sld [smem:[#allocation0]]
  $region65: #{discriminator_forward.1} parent=0
    _
  %s6 = ssub.s32 1, %s4
  %s7 = scalar_select 0, %s6, %s4
  $region1: #{discriminator_forward.1} parent=0
    #allocation3 [shape = 'u8[131072]{0}', space=vmem, size = 0x20000, scoped, tag = 'input window, operand 1']
    #allocation4 [shape = 's32[2]{0}', space=sflag, size = 0x8, scoped, tag = 'scoped memory for discriminator_forward.1']
    #allocation5 [shape = 'u8[65536]{0}', space=vmem, size = 0x10000, scoped, tag = 'input window, operand 2']
    #allocation6 [shape = 's32[2]{0}', space=sflag, size = 0x8, scoped, tag = 'scoped memory for discriminator_forward.1']
    %8 = vsyncpa [#allocation4], 0
    %s9 = scalar_lea.sflag [#allocation4], 1
    %10 = vsyncpa %s9, 0
    %11 = vsyncpa [#allocation6], 0
    %s12 = scalar_lea.sflag [#allocation6], 1
    %13 = vsyncpa %s12, 0
    loop: start=0, step=1, limit=20
    $region2: #{discriminator_forward.1} parent=1 // loop_pre_header
      _
    $region3: #{discriminator_forward.1} parent=1 // loop_header
      %s15 = sphi 0, %s19
      %p16 = scmp.ge.s32.totalorder %s15, 20
      %s22 = sphi 0, %s41
      %s23 = sphi 0, %s37
      %s24 = sphi 0, %s33
      %s25 = sphi 0, %s22
      %s26 = sphi 0, %s23
      %s27 = sphi 0, %s24
      %s28 = sphi 0, %s25
      %s29 = sphi 0, %s26
      %s30 = sphi 0, %s27
      %s44 = sphi 0, %s46
      %s47 = sphi 0, %s44
      %s48 = sphi 0, %s47
      %s64 = sphi 0, %s48
      %s76 = sphi 0, %s78
      %s79 = sphi 0, %s76
      %s80 = sphi 0, %s79
      %s96 = sphi 0, %s80
      %s106 = sphi 0, %s108
      %s109 = sphi 0, %s106
      %s110 = sphi 0, %s109
      %s126 = sphi 0, %s110
      %s132 = sphi 0, %s134
      %s135 = sphi 0, %s132
      %s136 = sphi 0, %s135
      %s152 = sphi 0, %s136
    $region4: #{discriminator_forward.1} parent=1 // loop_header_branch
      %18 = sbr.rel (%p16) target = $region8
    $region5: #{discriminator_forward.1} parent=1 // loop_body
      %s20 = ssub.s32 %s15, 1
      %s21 = ssub.s32 %s15, 2
      %s31 = sadd.s32 1, %s24
      %p32 = scmp.ge.s32.totalorder %s31, 3
      %s33 = scalar_select %p32, 0, %s31
      %s34 = sadd.s32 1, %s23
      %s35 = scalar_select %p32, %s34, %s23
      %p36 = scmp.ge.s32.totalorder %s35, 3
      %s37 = scalar_select %p36, 0, %s35
      %s38 = sadd.s32 1, %s22
      %s39 = scalar_select %p36, %s38, %s22
      %p40 = scmp.ge.s32.totalorder %s39, 2
      %s41 = scalar_select %p40, 0, %s39
      %s42 = ssub.s32 %s24, %s33
      %p43 = scmp.eq.s32.totalorder %s42, 0
      %s45 = sadd.s32 %s44, 1
      %s46 = scalar_select %p43, %s44, %s45
      %p49 = pneg %p43
      %p50 = scmp.eq.s32.totalorder %s15, 17
      %p51 = por %p49, %p50
      %p52 = scmp.ne.s32.totalorder %s44, %s47
      %p53 = scmp.eq.s32.totalorder %s15, 0
      %p54 = por %p52, %p53
      %p55 = scmp.ne.s32.totalorder %s44, %s47
      %p56 = scmp.eq.s32.totalorder %s20, 17
      %p57 = por %p55, %p56
      %p58 = scmp.ne.s32.totalorder %s47, %s48
      %p59 = scmp.eq.s32.totalorder %s20, 0
      %p60 = por %p58, %p59
      %p61 = scmp.ne.s32.totalorder %s47, %s48
      %p62 = scmp.eq.s32.totalorder %s21, 17
      %p63 = por %p61, %p62
      %p65 = scmp.ne.s32.totalorder %s48, %s64
      %p66 = scmp.eq.s32.totalorder %s21, 0
      %p67 = por %p65, %p66
      %s68 = smul.u32 %s22, 3
      %s69 = sadd.s32 %s68, %s23
      %s70 = smul.u32 %s41, 3
      %s71 = sadd.s32 %s70, %s37
      %s72 = ssub.s32 %s24, %s33
      %s73 = ssub.s32 %s69, %s71
      %s74 = sor.u32 %s72, %s73
      %p75 = scmp.eq.s32.totalorder %s74, 0
      %s77 = sadd.s32 %s76, 1
      %s78 = scalar_select %p75, %s76, %s77
      %p81 = pneg %p75
      %p82 = scmp.eq.s32.totalorder %s15, 17
      %p83 = por %p81, %p82
      %p84 = scmp.ne.s32.totalorder %s76, %s79
      %p85 = scmp.eq.s32.totalorder %s15, 0
      %p86 = por %p84, %p85
      %p87 = scmp.ne.s32.totalorder %s76, %s79
      %p88 = scmp.eq.s32.totalorder %s20, 17
      %p89 = por %p87, %p88
      %p90 = scmp.ne.s32.totalorder %s79, %s80
      %p91 = scmp.eq.s32.totalorder %s20, 0
      %p92 = por %p90, %p91
      %p93 = scmp.ne.s32.totalorder %s79, %s80
      %p94 = scmp.eq.s32.totalorder %s21, 17
      %p95 = por %p93, %p94
      %p97 = scmp.ne.s32.totalorder %s80, %s96
      %p98 = scmp.eq.s32.totalorder %s21, 0
      %p99 = por %p97, %p98
      %s100 = smul.u32 %s22, 3
      %s101 = sadd.s32 %s100, %s23
      %s102 = smul.u32 %s41, 3
      %s103 = sadd.s32 %s102, %s37
      %s104 = ssub.s32 %s101, %s103
      %p105 = scmp.eq.s32.totalorder %s104, 0
      %s107 = sadd.s32 %s106, 1
      %s108 = scalar_select %p105, %s106, %s107
      %p111 = pneg %p105
      %p112 = scmp.eq.s32.totalorder %s15, 17
      %p113 = por %p111, %p112
      %p114 = scmp.ne.s32.totalorder %s106, %s109
      %p115 = scmp.eq.s32.totalorder %s15, 0
      %p116 = por %p114, %p115
      %p117 = scmp.ne.s32.totalorder %s106, %s109
      %p118 = scmp.eq.s32.totalorder %s20, 17
      %p119 = por %p117, %p118
      %p120 = scmp.ne.s32.totalorder %s109, %s110
      %p121 = scmp.eq.s32.totalorder %s20, 0
      %p122 = por %p120, %p121
      %p123 = scmp.ne.s32.totalorder %s109, %s110
      %p124 = scmp.eq.s32.totalorder %s21, 17
      %p125 = por %p123, %p124
      %p127 = scmp.ne.s32.totalorder %s110, %s126
      %p128 = scmp.eq.s32.totalorder %s21, 0
      %p129 = por %p127, %p128
      %s130 = ssub.s32 %s22, %s41
      %p131 = scmp.eq.s32.totalorder %s130, 0
      %s133 = sadd.s32 %s132, 1
      %s134 = scalar_select %p131, %s132, %s133
      %p137 = pneg %p131
      %p138 = scmp.eq.s32.totalorder %s15, 17
      %p139 = por %p137, %p138
      %p140 = scmp.ne.s32.totalorder %s132, %s135
      %p141 = scmp.eq.s32.totalorder %s15, 0
      %p142 = por %p140, %p141
      %p143 = scmp.ne.s32.totalorder %s132, %s135
      %p144 = scmp.eq.s32.totalorder %s20, 17
      %p145 = por %p143, %p144
      %p146 = scmp.ne.s32.totalorder %s135, %s136
      %p147 = scmp.eq.s32.totalorder %s20, 0
      %p148 = por %p146, %p147
      %p149 = scmp.ne.s32.totalorder %s135, %s136
      %p150 = scmp.eq.s32.totalorder %s21, 17
      %p151 = por %p149, %p150
      %p153 = scmp.ne.s32.totalorder %s136, %s152
      %p154 = scmp.eq.s32.totalorder %s21, 0
      %p155 = por %p153, %p154
      %p156 = scmp.le.s32.totalorder 1, %s15
      %p157 = scmp.lt.s32.totalorder %s15, 19
      %p158 = pnand %p156, %p157
      %p159 = pneg %p158
      // Predicated region
      $region9: #{discriminator_forward.1} parent=5 // pred_check
        _
      $region10: #{discriminator_forward.1} parent=5 // pred_check_branch
        %161 = sbr.rel (%p158) target = $region12
      $region11: #{discriminator_forward.1} parent=5 // pred_region
        %s162 = ssub.s32 %s15, 1
      $region12: #{discriminator_forward.1} parent=5 // pred_fallthru
        _
      %p163 = scmp.lt.s32.totalorder %s15, 18
      // Predicated region
      $region13: #{discriminator_forward.1} parent=5 // pred_check
        %p164 = pneg %p163
      $region14: #{discriminator_forward.1} parent=5 // pred_check_branch
        %166 = sbr.rel (%p164) target = $region16
      $region15: #{discriminator_forward.1} parent=5 // pred_region
        // Predicated region
        $region17: #{discriminator_forward.1} parent=15 // pred_check
          %p167 = pneg %p54
        $region18: #{discriminator_forward.1} parent=15 // pred_check_branch
          %169 = sbr.rel (%p167) target = $region20
        $region19: #{discriminator_forward.1} parent=15 // pred_region
          %s170 = smul.u32 2, %s24
          %p171 = scmp.lt.s32.totalorder %s170, 5
          %s172 = scalar_select %p171, %s170, 5
          %s173 = smul.addr %s172, 4
          %s174 = scalar_lea.vmem %s0, %s173
          %s175 = smul.u32 2, %s24
        $region20: #{discriminator_forward.1} parent=15 // pred_fallthru
          _
        // Predicated region
        $region21: #{discriminator_forward.1} parent=15 // pred_check
          %p176 = pneg %p86
        $region22: #{discriminator_forward.1} parent=15 // pred_check_branch
          %178 = sbr.rel (%p176) target = $region24
        $region23: #{discriminator_forward.1} parent=15 // pred_region
          %s179 = sand.u32 %s76, 1
          %s180 = scalar_lea.sflag [#allocation4], %s179
          %s181 = sand.u32 %s76, 1
          %s182 = smul.addr %s181, 128
          %s183 = scalar_lea.vmem [#allocation3], %s182
          %s184 = smul.u32 %s22, 3
          %s185 = sadd.s32 %s184, %s23
          %s186 = smul.u32 32, %s24
          %188 = vsyncadd %s180, 0
          %s189 = smul.addr %s186, 6
          %s190 = sadd.s32 %s185, %s189
          %s191 = smul.addr %s190, 4
          %s192 = scalar_lea.hbm %s1, %s191
          %s193 = sshll.u32 %s192, 4
          %s194 = int_to_ptr.hbm [resolvable:$true] %s193
          %s195 = sshll.u32 %s183, 4
          %s196 = int_to_ptr.vmem [resolvable:$true] %s195
          %201 = dma.hbm_to_vmem [thread:$0]  %s194, 2048, %s196, %s180, 384, 64, 4
        $region24: #{discriminator_forward.1} parent=15 // pred_fallthru
          _
        // Predicated region
        $region25: #{discriminator_forward.1} parent=15 // pred_check
          %p202 = pneg %p116
        $region26: #{discriminator_forward.1} parent=15 // pred_check_branch
          %204 = sbr.rel (%p202) target = $region28
        $region27: #{discriminator_forward.1} parent=15 // pred_region
          %s205 = sand.u32 %s106, 1
          %s206 = scalar_lea.sflag [#allocation6], %s205
          %s207 = sand.u32 %s106, 1
          %s208 = smul.addr %s207, 64
          %s209 = scalar_lea.vmem [#allocation5], %s208
          %s210 = smul.u32 %s22, 3
          %s211 = sadd.s32 %s210, %s23
          %s212 = smul.u32 16, %s211
          %214 = vsyncadd %s206, 0
          %s215 = smul.addr %s212, 4
          %s216 = scalar_lea.hbm %s2, %s215
          %s217 = sshll.u32 %s216, 4
          %s218 = int_to_ptr.hbm [resolvable:$true] %s217
          %s219 = sshll.u32 %s209, 4
          %s220 = int_to_ptr.vmem [resolvable:$true] %s219
          %225 = dma.hbm_to_vmem [thread:$0]  %s218, 1024, %s220, %s206, 64, 64, 4
        $region28: #{discriminator_forward.1} parent=15 // pred_fallthru
          _
      $region16: #{discriminator_forward.1} parent=5 // pred_fallthru
        _
      %p226 = scmp.le.s32.totalorder 1, %s15
      %p227 = scmp.lt.s32.totalorder %s15, 19
      %p228 = pnand %p226, %p227
      %p229 = pneg %p228
      // Predicated region
      $region29: #{discriminator_forward.1} parent=5 // pred_check
        _
      $region30: #{discriminator_forward.1} parent=5 // pred_check_branch
        %231 = sbr.rel (%p228) target = $region32
      $region31: #{discriminator_forward.1} parent=5 // pred_region
        %s232 = ssub.s32 %s15, 1
        %s233 = sand.u32 %s79, 1
        %s234 = scalar_lea.sflag [#allocation4], %s233
        %s235 = sand.u32 %s79, 1
        %s236 = smul.addr %s235, 128
        %s237 = scalar_lea.vmem [#allocation3], %s236
        // Predicated region
        $region33: #{discriminator_forward.1} parent=31 // pred_check
          %p238 = pneg %p92
        $region34: #{discriminator_forward.1} parent=31 // pred_check_branch
          %240 = sbr.rel (%p238) target = $region36
        $region35: #{discriminator_forward.1} parent=31 // pred_region
          %242 = dma.done %s234, 2048
        $region36: #{discriminator_forward.1} parent=31 // pred_fallthru
          _
        %s243 = sand.u32 %s109, 1
        %s244 = scalar_lea.sflag [#allocation6], %s243
        %s245 = sand.u32 %s109, 1
        %s246 = smul.addr %s245, 64
        %s247 = scalar_lea.vmem [#allocation5], %s246
        // Predicated region
        $region37: #{discriminator_forward.1} parent=31 // pred_check
          %p248 = pneg %p122
        $region38: #{discriminator_forward.1} parent=31 // pred_check_branch
          %250 = sbr.rel (%p248) target = $region40
        $region39: #{discriminator_forward.1} parent=31 // pred_region
          %252 = dma.done %s244, 1024
        $region40: #{discriminator_forward.1} parent=31 // pred_fallthru
          _
        %s253 = smul.u32 2, %s27
        %p254 = scmp.lt.s32.totalorder %s253, 5
        %s255 = scalar_select %p254, %s253, 5
        %s256 = smul.addr %s255, 4
        %s257 = scalar_lea.vmem %s0, %s256
        %p258 = pneg %p60
        %p259 = pneg %p57
        %s260 = sand.u32 %s79, 1
        %s261 = scalar_lea.sflag [#allocation4], %s260
        %s262 = sand.u32 %s79, 1
        %s263 = smul.addr %s262, 128
        %s264 = scalar_lea.vmem [#allocation3], %s263
        %p265 = pneg %p92
        %p266 = pneg %p89
        %s267 = sand.u32 %s109, 1
        %s268 = scalar_lea.sflag [#allocation6], %s267
        %s269 = sand.u32 %s109, 1
        %s270 = smul.addr %s269, 64
        %s271 = scalar_lea.vmem [#allocation5], %s270
        %p272 = pneg %p122
        %p273 = pneg %p119
        %p274 = pneg %p148
        %p275 = pneg %p145
        %p276 = scmp.lt.s32.totalorder %s25, 1
        %s277 = scalar_select %p276, %s25, 1
        %s278 = smul.addr %s277, 8
        %s279 = scalar_lea.vmem %s3, %s278
        %s280 = smul.u32 2, %s27
        %p281 = scmp.lt.s32.totalorder %s280, 5
        %s282 = scalar_select %p281, %s280, 5
        %s283 = smul.addr %s282, 4
        %s284 = scalar_lea.vmem %s0, %s283
        %s285 = smul.u32 2, %s27
        %s286 = smul.u32 %s25, 3
        %s287 = sadd.s32 %s286, %s26
        %s288 = smul.u32 32, %s27
        %s289 = smul.u32 %s25, 3
        %s290 = sadd.s32 %s289, %s26
        %s291 = smul.u32 16, %s290
        %p292 = scmp.lt.s32.totalorder %s25, 1
        %s293 = scalar_select %p292, %s25, 1
        %s294 = smul.addr %s293, 8
        %s295 = scalar_lea.vmem %s3, %s294
        %p296 = scmp.eq.s32.totalorder %s26, 0
        %p297 = scmp.eq.s32.totalorder %s27, 0
        %p298 = pnand %p296, %p297
        %p299 = pneg %p298
        // Predicated region
        $region41: #{discriminator_forward.1} parent=31 // pred_check
          _
        $region42: #{discriminator_forward.1} parent=31 // pred_check_branch
          %301 = sbr.rel (%p298) target = $region44
        $region43: #{discriminator_forward.1} parent=31 // pred_region
          %302 = vst [vmem:[%s295] sm:$0xff] 0.0
        $region44: #{discriminator_forward.1} parent=31 // pred_fallthru
          _
        // Predicated region
        $region45: #{discriminator_forward.1} parent=31 // pred_check
          %p303 = pneg %p297
        $region46: #{discriminator_forward.1} parent=31 // pred_check_branch
          %305 = sbr.rel (%p303) target = $region48
        $region47: #{discriminator_forward.1} parent=31 // pred_region
          %306 = vst [vmem:[#allocation2] sm:$0xff] 0.0
        $region48: #{discriminator_forward.1} parent=31 // pred_fallthru
          _
        %v307 = vld [vmem:[#allocation2] sm:$0xff]
        %v308 = vld [vmem:[%s284] sm:$0xff]
        %v309 = vld [vmem:[%s237] sm:$0xf]
        %v310 = vld [vmem:[%s237 + $0x4] sm:$0xf]
        %v311 = vld [vmem:[%s237 + $0x8] sm:$0xf]
        %v312 = vld [vmem:[%s237 + $0xc] sm:$0xf]
        %v313 = vld [vmem:[%s237 + $0x10] sm:$0xf]
        %v314 = vld [vmem:[%s237 + $0x14] sm:$0xf]
        %v315 = vld [vmem:[%s237 + $0x18] sm:$0xf]
        %v316 = vld [vmem:[%s237 + $0x1c] sm:$0xf]
        %v317 = vld [vmem:[%s237 + $0x20] sm:$0xf]
        %v318 = vld [vmem:[%s237 + $0x24] sm:$0xf]
        %v319 = vld [vmem:[%s237 + $0x28] sm:$0xf]
        %v320 = vld [vmem:[%s237 + $0x2c] sm:$0xf]
        %v321 = vld [vmem:[%s237 + $0x30] sm:$0xf]
        %v322 = vld [vmem:[%s237 + $0x34] sm:$0xf]
        %v323 = vld [vmem:[%s237 + $0x38] sm:$0xf]
        %v324 = vld [vmem:[%s237 + $0x3c] sm:$0xf]
        %v325 = vld [vmem:[%s237 + $0x40] sm:$0xf]
        %v326 = vld [vmem:[%s237 + $0x44] sm:$0xf]
        %v327 = vld [vmem:[%s237 + $0x48] sm:$0xf]
        %v328 = vld [vmem:[%s237 + $0x4c] sm:$0xf]
        %v329 = vld [vmem:[%s237 + $0x50] sm:$0xf]
        %v330 = vld [vmem:[%s237 + $0x54] sm:$0xf]
        %v331 = vld [vmem:[%s237 + $0x58] sm:$0xf]
        %v332 = vld [vmem:[%s237 + $0x5c] sm:$0xf]
        %v333 = vld [vmem:[%s237 + $0x60] sm:$0xf]
        %v334 = vld [vmem:[%s237 + $0x64] sm:$0xf]
        %v335 = vld [vmem:[%s237 + $0x68] sm:$0xf]
        %v336 = vld [vmem:[%s237 + $0x6c] sm:$0xf]
        %v337 = vld [vmem:[%s237 + $0x70] sm:$0xf]
        %v338 = vld [vmem:[%s237 + $0x74] sm:$0xf]
        %v339 = vld [vmem:[%s237 + $0x78] sm:$0xf]
        %v340 = vld [vmem:[%s237 + $0x7c] sm:$0xf]
        %v342 = vunpack.c.l.b16 %v308
        %v343 = vunpack.c.h.b16 %v308
        %v344 = vpack.c.b16 %v342, %v342
        %v345 = vpack.c.b16 %v343, %v343
        %v380 = vunpack.c.l.b16 %v309
        %v381 = vunpack.c.l.b16 %v310
        %v382 = vunpack.c.l.b16 %v311
        %v383 = vunpack.c.l.b16 %v312
        %v384 = vunpack.c.l.b16 %v313
        %v385 = vunpack.c.l.b16 %v314
        %v386 = vunpack.c.l.b16 %v315
        %v387 = vunpack.c.l.b16 %v316
        %v388 = vunpack.c.l.b16 %v317
        %v389 = vunpack.c.l.b16 %v318
        %v390 = vunpack.c.l.b16 %v319
        %v391 = vunpack.c.l.b16 %v320
        %v392 = vunpack.c.l.b16 %v321
        %v393 = vunpack.c.l.b16 %v322
        %v394 = vunpack.c.l.b16 %v323
        %v395 = vunpack.c.l.b16 %v324
        %v396 = vunpack.c.l.b16 %v325
        %v397 = vunpack.c.l.b16 %v326
        %v398 = vunpack.c.l.b16 %v327
        %v399 = vunpack.c.l.b16 %v328
        %v400 = vunpack.c.l.b16 %v329
        %v401 = vunpack.c.l.b16 %v330
        %v402 = vunpack.c.l.b16 %v331
        %v403 = vunpack.c.l.b16 %v332
        %v404 = vunpack.c.l.b16 %v333
        %v405 = vunpack.c.l.b16 %v334
        %v406 = vunpack.c.l.b16 %v335
        %v407 = vunpack.c.l.b16 %v336
        %v408 = vunpack.c.l.b16 %v337
        %v409 = vunpack.c.l.b16 %v338
        %v410 = vunpack.c.l.b16 %v339
        %v411 = vunpack.c.l.b16 %v340
        %v412 = vpack.c.b16 %v381, %v380
        %v413 = vpack.c.b16 %v383, %v382
        %v414 = vpack.c.b16 %v385, %v384
        %v415 = vpack.c.b16 %v387, %v386
        %v416 = vpack.c.b16 %v389, %v388
        %v417 = vpack.c.b16 %v391, %v390
        %v418 = vpack.c.b16 %v393, %v392
        %v419 = vpack.c.b16 %v395, %v394
        %v420 = vpack.c.b16 %v397, %v396
        %v421 = vpack.c.b16 %v399, %v398
        %v422 = vpack.c.b16 %v401, %v400
        %v423 = vpack.c.b16 %v403, %v402
        %v424 = vpack.c.b16 %v405, %v404
        %v425 = vpack.c.b16 %v407, %v406
        %v426 = vpack.c.b16 %v409, %v408
        %v427 = vpack.c.b16 %v411, %v410
        %444 = vmatpush.bf16.msra.mxu0 %v419
        %445 = vmatpush.bf16.msra.mxu0 %v418
        %446 = vmatpush.bf16.msra.mxu0 %v417
        %447 = vmatpush.bf16.msra.mxu0 %v416
        %448 = vmatpush.bf16.msra.mxu0 %v415
        %449 = vmatpush.bf16.msra.mxu0 %v414
        %450 = vmatpush.bf16.msra.mxu0 %v413
        %451 = vmatpush.bf16.msra.mxu0 %v412
        %452 = vmatmul.bf16.gmra.mxu0 %v344
        %v453 = vpop.f32.mrf.mxu0
        %v454 = vadd.f32 0.0, %v453
        %v455 = vpop.f32.mrf.mxu0
        %456 = vdwg.mxu0
        %457 = vmatpush.bf16.msra.mxu0 %v427
        %458 = vmatpush.bf16.msra.mxu0 %v426
        %459 = vmatpush.bf16.msra.mxu0 %v425
        %460 = vmatpush.bf16.msra.mxu0 %v424
        %461 = vmatpush.bf16.msra.mxu0 %v423
        %462 = vmatpush.bf16.msra.mxu0 %v422
        %463 = vmatpush.bf16.msra.mxu0 %v421
        %464 = vmatpush.bf16.msra.mxu0 %v420
        %465 = vmatmul.bf16.gmra.mxu0 %v345
        %v466 = vpop.f32.mrf.mxu0
        %v467 = vadd.f32 %v454, %v466
        %v468 = vpop.f32.mrf.mxu0
        %469 = vdwg.mxu0
        %v470 = vadd.f32 %v307, %v467
        %471 = vst [vmem:[#allocation2] sm:$0xff] %v470
        %p472 = scmp.eq.s32.totalorder %s27, 2
        // Predicated region
        $region49: #{discriminator_forward.1} parent=31 // pred_check
          %p473 = pneg %p472
        $region50: #{discriminator_forward.1} parent=31 // pred_check_branch
          %475 = sbr.rel (%p473) target = $region52
        $region51: #{discriminator_forward.1} parent=31 // pred_region
          %v476 = vld [vmem:[#allocation2] sm:$0xff]
          %v477 = vmul.f32 %v476, 0.2
          %v478 = vmax.f32 %v476, %v477
          %v479 = vld [vmem:[%s247] sm:$0xf]
          %v480 = vld [vmem:[%s247 + $0x4] sm:$0xf]
          %v481 = vld [vmem:[%s247 + $0x8] sm:$0xf]
          %v482 = vld [vmem:[%s247 + $0xc] sm:$0xf]
          %v483 = vld [vmem:[%s247 + $0x10] sm:$0xf]
          %v484 = vld [vmem:[%s247 + $0x14] sm:$0xf]
          %v485 = vld [vmem:[%s247 + $0x18] sm:$0xf]
          %v486 = vld [vmem:[%s247 + $0x1c] sm:$0xf]
          %v487 = vld [vmem:[%s247 + $0x20] sm:$0xf]
          %v488 = vld [vmem:[%s247 + $0x24] sm:$0xf]
          %v489 = vld [vmem:[%s247 + $0x28] sm:$0xf]
          %v490 = vld [vmem:[%s247 + $0x2c] sm:$0xf]
          %v491 = vld [vmem:[%s247 + $0x30] sm:$0xf]
          %v492 = vld [vmem:[%s247 + $0x34] sm:$0xf]
          %v493 = vld [vmem:[%s247 + $0x38] sm:$0xf]
          %v494 = vld [vmem:[%s247 + $0x3c] sm:$0xf]
          %v495 = vld [vmem:[%s295] sm:$0xff]
          %v496 = vpack.c.bf16 %v478, %v478
          %v513 = vunpack.c.l.b16 %v479
          %v514 = vunpack.c.l.b16 %v480
          %v515 = vunpack.c.l.b16 %v481
          %v516 = vunpack.c.l.b16 %v482
          %v517 = vunpack.c.l.b16 %v483
          %v518 = vunpack.c.l.b16 %v484
          %v519 = vunpack.c.l.b16 %v485
          %v520 = vunpack.c.l.b16 %v486
          %v521 = vunpack.c.l.b16 %v487
          %v522 = vunpack.c.l.b16 %v488
          %v523 = vunpack.c.l.b16 %v489
          %v524 = vunpack.c.l.b16 %v490
          %v525 = vunpack.c.l.b16 %v491
          %v526 = vunpack.c.l.b16 %v492
          %v527 = vunpack.c.l.b16 %v493
          %v528 = vunpack.c.l.b16 %v494
          %v529 = vpack.c.b16 %v514, %v513
          %v530 = vpack.c.b16 %v516, %v515
          %v531 = vpack.c.b16 %v518, %v517
          %v532 = vpack.c.b16 %v520, %v519
          %v533 = vpack.c.b16 %v522, %v521
          %v534 = vpack.c.b16 %v524, %v523
          %v535 = vpack.c.b16 %v526, %v525
          %v536 = vpack.c.b16 %v528, %v527
          %545 = vmatpush.bf16.msra.mxu0 %v536
          %546 = vmatpush.bf16.msra.mxu0 %v535
          %547 = vmatpush.bf16.msra.mxu0 %v534
          %548 = vmatpush.bf16.msra.mxu0 %v533
          %549 = vmatpush.bf16.msra.mxu0 %v532
          %550 = vmatpush.bf16.msra.mxu0 %v531
          %551 = vmatpush.bf16.msra.mxu0 %v530
          %552 = vmatpush.bf16.msra.mxu0 %v529
          %553 = vmatmul.bf16.gmra.mxu0 %v496
          %v554 = vpop.f32.mrf.mxu0
          %v555 = vadd.f32 0.0, %v554
          %v556 = vpop.f32.mrf.mxu0
          %557 = vdwg.mxu0
          %v558 = vadd.f32 %v495, %v555
          %559 = vst [vmem:[%s295] sm:$0xff] %v558
        $region52: #{discriminator_forward.1} parent=31 // pred_fallthru
          _
        %p560 = scmp.lt.s32.totalorder %s25, 1
        %s561 = scalar_select %p560, %s25, 1
        %s562 = smul.addr %s561, 8
        %s563 = scalar_lea.vmem %s3, %s562
        // Predicated region
        $region53: #{discriminator_forward.1} parent=31 // pred_check
          %p564 = pneg %p145
        $region54: #{discriminator_forward.1} parent=31 // pred_check_branch
          %566 = sbr.rel (%p564) target = $region56
        $region55: #{discriminator_forward.1} parent=31 // pred_region
          _
        $region56: #{discriminator_forward.1} parent=31 // pred_fallthru
          _
      $region32: #{discriminator_forward.1} parent=5 // pred_fallthru
        _
      %p567 = scmp.le.s32.totalorder 2, %s15
      // Predicated region
      $region57: #{discriminator_forward.1} parent=5 // pred_check
        %p568 = pneg %p567
      $region58: #{discriminator_forward.1} parent=5 // pred_check_branch
        %570 = sbr.rel (%p568) target = $region60
      $region59: #{discriminator_forward.1} parent=5 // pred_region
        %s571 = ssub.s32 %s15, 2
        // Predicated region
        $region61: #{discriminator_forward.1} parent=59 // pred_check
          %p572 = pneg %p151
        $region62: #{discriminator_forward.1} parent=59 // pred_check_branch
          %574 = sbr.rel (%p572) target = $region64
        $region63: #{discriminator_forward.1} parent=59 // pred_region
          %p575 = scmp.lt.s32.totalorder %s28, 1
          %s576 = scalar_select %p575, %s28, 1
          %s577 = smul.addr %s576, 8
          %s578 = scalar_lea.vmem %s3, %s577
        $region64: #{discriminator_forward.1} parent=59 // pred_fallthru
          _
      $region60: #{discriminator_forward.1} parent=5 // pred_fallthru
        _
    $region6: #{discriminator_forward.1} parent=1 // loop_footer
      %s19 = sadd.s32 1, %s15
    $region7: #{discriminator_forward.1} parent=1 // loop_footer_branch
      %14 = sbr.rel target = $region3
    $region8: #{discriminator_forward.1} parent=1 // loop_exit
      _
    %579 = vsyncpa [#allocation4], 1
    %s580 = scalar_lea.sflag [#allocation4], 1
    %581 = vsyncpa %s580, 1
    %582 = vsyncpa [#allocation6], 1
    %s583 = scalar_lea.sflag [#allocation6], 1
    %584 = vsyncpa %s583, 1

</llo_original>
